<compile_context>
chip_gen: v6e
topology: v6e:2x2x1
jax: 0.10.0
libtpu: 0.0.40
codegen_flags: <defaults>
</compile_context>

<pallas_src>
import functools
import math

import jax
import jax.numpy as jnp
from jax.experimental import pallas as pl
from jax.experimental.pallas import tpu as pltpu


def _round_up(x, m):
    return ((x + m - 1) // m) * m


# ----------------------------------------------------------------------------
# Pallas kernel: masked softmax attention over the selected ("top-u") queries.
# Online softmax over K blocks so VMEM stays bounded for long sequences.
# ----------------------------------------------------------------------------
def _prob_attn_kernel(qpos_ref, q_ref, k_ref, v_ref, o_ref,
                      m_scr, l_scr, acc_scr, *, scale, l_k, block_k, causal):
    kb = pl.program_id(1)

    @pl.when(kb == 0)
    def _():
        m_scr[...] = jnp.full_like(m_scr, -jnp.inf)
        l_scr[...] = jnp.zeros_like(l_scr)
        acc_scr[...] = jnp.zeros_like(acc_scr)

    q = q_ref[0]            # (u_pad, D)   selected queries
    k = k_ref[0]            # (block_k, D) key tile
    v = v_ref[0]            # (block_k, D) value tile
    qpos = qpos_ref[0]      # (u_pad, 1)   original positions of selected queries

    # scores = (Q_reduce @ K^T) * scale  -- bf16 operands, f32 accumulation (MXU)
    s = jax.lax.dot_general(
        q.astype(jnp.bfloat16), k.astype(jnp.bfloat16),
        dimension_numbers=(((1,), (1,)), ((), ())),
        preferred_element_type=jnp.float32) * scale          # (u_pad, block_k)

    # ProbMask: key position > query position is masked (triu(1) gathered at
    # the selected query indices); also mask zero-padded key rows.
    kpos = kb * block_k + jax.lax.broadcasted_iota(jnp.int32, s.shape, 1)
    mask = kpos >= l_k
    if causal:
        mask = mask | (kpos > qpos)
    s = jnp.where(mask, jnp.float32(-1e30), s)

    # Online softmax accumulation.
    m_prev = m_scr[...]
    m_new = jnp.maximum(m_prev, jnp.max(s, axis=-1, keepdims=True))
    alpha = jnp.exp(m_prev - m_new)
    p = jnp.exp(s - m_new)
    p = jnp.where(mask, 0.0, p)

    l_scr[...] = alpha * l_scr[...] + jnp.sum(p, axis=-1, keepdims=True)
    acc_scr[...] = alpha * acc_scr[...] + jnp.dot(
        p.astype(jnp.bfloat16), v.astype(jnp.bfloat16),
        preferred_element_type=jnp.float32)
    m_scr[...] = m_new

    @pl.when(kb == pl.num_programs(1) - 1)
    def _():
        inv_l = pl.reciprocal(l_scr[...], approx=True)
        o_ref[0] = (acc_scr[...] * inv_l).astype(o_ref.dtype)


def _prob_attn_pallas(q_red, k, v, q_index, scale, l_k, *, causal,
                      block_k_max=512):
    """softmax(mask(scale * q_red @ k^T)) @ v per (batch, head)."""
    B, H, u, D = q_red.shape
    BH = B * H

    q = q_red.reshape(BH, u, D).astype(jnp.float32)
    qpos = q_index.reshape(BH, u).astype(jnp.int32)
    kk = k.reshape(BH, -1, D).astype(jnp.float32)
    vv = v.reshape(BH, -1, D).astype(jnp.float32)

    # Pad the selected-query axis to a sublane multiple; padded rows get a huge
    # position (never causally masked) and are dropped after the call.
    u_pad = _round_up(max(u, 8), 8)
    if u_pad != u:
        q = jnp.pad(q, ((0, 0), (0, u_pad - u), (0, 0)))
        qpos = jnp.pad(qpos, ((0, 0), (0, u_pad - u)),
                       constant_values=jnp.int32(2 ** 30))
    qpos = qpos[..., None]                                   # (BH, u_pad, 1)

    # Tile the K/V axis so per-step VMEM stays bounded regardless of L_K.
    L_K = kk.shape[1]
    if L_K <= block_k_max:
        lk_pad = _round_up(max(L_K, 8), 8)
        block_k = lk_pad
    else:
        block_k = block_k_max
        lk_pad = _round_up(L_K, block_k)
    if lk_pad != L_K:
        kk = jnp.pad(kk, ((0, 0), (0, lk_pad - L_K), (0, 0)))
        vv = jnp.pad(vv, ((0, 0), (0, lk_pad - L_K), (0, 0)))
    nkb = lk_pad // block_k

    kernel = functools.partial(
        _prob_attn_kernel, scale=float(scale), l_k=int(l_k),
        block_k=int(block_k), causal=bool(causal))

    out = pl.pallas_call(
        kernel,
        out_shape=jax.ShapeDtypeStruct((BH, u_pad, D), jnp.float32),
        grid_spec=pltpu.PrefetchScalarGridSpec(
            num_scalar_prefetch=0,
            grid=(BH, nkb),
            in_specs=[
                pl.BlockSpec((1, u_pad, 1), lambda bh, kb: (bh, 0, 0)),
                pl.BlockSpec((1, u_pad, D), lambda bh, kb: (bh, 0, 0)),
                pl.BlockSpec((1, block_k, D), lambda bh, kb: (bh, kb, 0)),
                pl.BlockSpec((1, block_k, D), lambda bh, kb: (bh, kb, 0)),
            ],
            out_specs=pl.BlockSpec((1, u_pad, D), lambda bh, kb: (bh, 0, 0)),
            scratch_shapes=[
                pltpu.VMEM((u_pad, 1), jnp.float32),   # running max
                pltpu.VMEM((u_pad, 1), jnp.float32),   # running denom
                pltpu.VMEM((u_pad, D), jnp.float32),   # output accumulator
            ],
        ),
        compiler_params=pltpu.CompilerParams(
            dimension_semantics=("parallel", "arbitrary")),
    )(qpos, q, kk, vv)

    return out[:, :u, :].reshape(B, H, u, D)


# ----------------------------------------------------------------------------
# Plain-JAX glue: sampling, sparsity measure, top-k, initial context, scatter
# ----------------------------------------------------------------------------
def prob_attention_forward(queries, keys, values, attn_mask=None, tau=None,
                           delta=None, *, mask_flag=True, factor=5,
                           scale=None, rng_key=None):
    """JAX/Pallas port of ProbAttention.forward (output_attention=False)."""
    del attn_mask, tau, delta  # causal ProbMask is built internally; tau/delta unused
    B, L_Q, H, D = queries.shape
    _, L_K, _, _ = keys.shape

    Q = jnp.transpose(queries, (0, 2, 1, 3)).astype(jnp.float32)  # (B,H,L_Q,D)
    K = jnp.transpose(keys, (0, 2, 1, 3)).astype(jnp.float32)     # (B,H,L_K,D)
    V = jnp.transpose(values, (0, 2, 1, 3)).astype(jnp.float32)   # (B,H,L_K,D)

    U_part = min(int(factor * math.ceil(math.log(L_K))), L_K)     # sample_k
    u = min(int(factor * math.ceil(math.log(L_Q))), L_Q)          # n_top

    # --- _prob_QK sampling stage (random gather + top-k: plain-JAX glue) ---
    # TODO(synk): torch.randint is drawn fresh each forward; here it comes from
    # an explicit PRNG key for determinism.
    index_sample = jax.random.randint(rng_key, (L_Q, U_part), 0, L_K)
    K_sample = K[:, :, index_sample, :]                           # (B,H,L_Q,U_part,D)
    Q_K_sample = jnp.einsum('bhqd,bhqsd->bhqs', Q, K_sample)
    M = jnp.max(Q_K_sample, axis=-1) - jnp.sum(Q_K_sample, axis=-1) / L_K
    M_top = jax.lax.top_k(M, u)[1].astype(jnp.int32)              # (B,H,u)
    Q_reduce = jnp.take_along_axis(Q, M_top[..., None], axis=2)   # (B,H,u,D)

    scale_ = scale if scale is not None else 1.0 / math.sqrt(D)

    # --- hot path in Pallas: scores, ProbMask, softmax, @ V ---
    ctx_update = _prob_attn_pallas(Q_reduce, K, V, M_top, scale_, L_K,
                                   causal=mask_flag)              # (B,H,u,D)

    # --- initial context + scatter at selected query positions ---
    if mask_flag:
        assert L_Q == L_K  # matches reference assert L_Q == L_V
        context = jnp.cumsum(V, axis=2)
    else:
        context = jnp.broadcast_to(
            jnp.mean(V, axis=2, keepdims=True), (B, H, L_Q, D))

    b_idx = jnp.arange(B)[:, None, None]
    h_idx = jnp.arange(H)[None, :, None]
    context = context.at[b_idx, h_idx, M_top, :].set(
        ctx_update.astype(context.dtype))

    return context, None  # output_attention=False


if __name__ == "__main__":
    key = jax.random.PRNGKey(0)
    kq, kk_, kv_, ks = jax.random.split(key, 4)

    # queries/keys/values: (B, L, H, D) as in ProbAttention.forward
    B, L, H, D = 2, 16, 4, 32
    queries = jax.random.normal(kq, (B, L, H, D), jnp.float32)
    keys = jax.random.normal(kk_, (B, L, H, D), jnp.float32)
    values = jax.random.normal(kv_, (B, L, H, D), jnp.float32)

    context, attn = prob_attention_forward(
        queries, keys, values, None, None, None,
        mask_flag=True, factor=5, scale=None, rng_key=ks)

    context = jax.block_until_ready(context)
    assert context.shape == (B, H, L, D)
    assert attn is None
    assert bool(jnp.all(jnp.isfinite(context)))
    print("KERNEL_OK")
</pallas_src>

<mosaic_0001>
module attributes {stable_mosaic.version = 11 : i64} {
  func.func @_prob_attn_kernel(%arg0: i32, %arg1: i32, %arg2: memref<1x16x1xi32, #tpu.memory_space<vmem>>, %arg3: memref<1x16x32xf32, #tpu.memory_space<vmem>>, %arg4: memref<1x16x32xf32, #tpu.memory_space<vmem>>, %arg5: memref<1x16x32xf32, #tpu.memory_space<vmem>>, %arg6: memref<1x16x32xf32, #tpu.memory_space<vmem>>, %arg7: memref<16x1xf32, #tpu.memory_space<vmem>>, %arg8: memref<16x1xf32, #tpu.memory_space<vmem>>, %arg9: memref<16x32xf32, #tpu.memory_space<vmem>>) attributes {dimension_semantics = [#tpu.dimension_semantics<parallel>, #tpu.dimension_semantics<arbitrary>], iteration_bounds = array<i64: 8, 1>, scalar_prefetch = 0 : i64, scratch_operands = 3 : i64, tpu.core_type = #tpu.core_type<tc>, window_params = [{transform_indices = @transform_0, window_bounds = array<i64: 1, 16, 1>}, {transform_indices = @transform_1, window_bounds = array<i64: 1, 16, 32>}, {transform_indices = @transform_2, window_bounds = array<i64: 1, 16, 32>}, {transform_indices = @transform_3, window_bounds = array<i64: 1, 16, 32>}, {transform_indices = @transform_4, window_bounds = array<i64: 1, 16, 32>}]} {
    %c0_i32 = arith.constant 0 : i32
    %0 = arith.cmpi eq, %arg1, %c0_i32 : i32
    %1 = arith.extui %0 : i1 to i32
    %c0_i32_0 = arith.constant 0 : i32
    %2 = arith.cmpi ne, %1, %c0_i32_0 : i32
    scf.if %2 {
      %cst_33 = arith.constant 0xFF800000 : f32
      %56 = vector.broadcast %cst_33 : f32 to vector<16x1xf32>
      %c0_34 = arith.constant 0 : index
      %c0_35 = arith.constant 0 : index
      %57 = vector.load %arg7[%c0_34, %c0_35] : memref<16x1xf32, #tpu.memory_space<vmem>>, vector<16x1xf32>
      tpu.vector_store %arg7[%c0_34, %c0_35], %56 {strides = array<i32>} : memref<16x1xf32, #tpu.memory_space<vmem>>, vector<16x1xf32>,
      %cst_36 = arith.constant 0.000000e+00 : f32
      %58 = vector.broadcast %cst_36 : f32 to vector<16x1xf32>
      %c0_37 = arith.constant 0 : index
      %c0_38 = arith.constant 0 : index
      %59 = vector.load %arg8[%c0_37, %c0_38] : memref<16x1xf32, #tpu.memory_space<vmem>>, vector<16x1xf32>
      tpu.vector_store %arg8[%c0_37, %c0_38], %58 {strides = array<i32>} : memref<16x1xf32, #tpu.memory_space<vmem>>, vector<16x1xf32>,
      %cst_39 = arith.constant 0.000000e+00 : f32
      %60 = vector.broadcast %cst_39 : f32 to vector<16x32xf32>
      %c0_40 = arith.constant 0 : index
      %c0_41 = arith.constant 0 : index
      %61 = vector.load %arg9[%c0_40, %c0_41] : memref<16x32xf32, #tpu.memory_space<vmem>>, vector<16x32xf32>
      tpu.vector_store %arg9[%c0_40, %c0_41], %60 {strides = array<i32>} : memref<16x32xf32, #tpu.memory_space<vmem>>, vector<16x32xf32>,
    } else {
    }
    %c0 = arith.constant 0 : index
    %c0_1 = arith.constant 0 : index
    %c0_2 = arith.constant 0 : index
    %3 = vector.load %arg3[%c0, %c0_1, %c0_2] : memref<1x16x32xf32, #tpu.memory_space<vmem>>, vector<1x16x32xf32>
    %4 = vector.shape_cast %3 : vector<1x16x32xf32> to vector<16x32xf32>
    %c0_3 = arith.constant 0 : index
    %c0_4 = arith.constant 0 : index
    %c0_5 = arith.constant 0 : index
    %5 = vector.load %arg4[%c0_3, %c0_4, %c0_5] : memref<1x16x32xf32, #tpu.memory_space<vmem>>, vector<1x16x32xf32>
    %6 = vector.shape_cast %5 : vector<1x16x32xf32> to vector<16x32xf32>
    %c0_6 = arith.constant 0 : index
    %c0_7 = arith.constant 0 : index
    %c0_8 = arith.constant 0 : index
    %7 = vector.load %arg5[%c0_6, %c0_7, %c0_8] : memref<1x16x32xf32, #tpu.memory_space<vmem>>, vector<1x16x32xf32>
    %8 = vector.shape_cast %7 : vector<1x16x32xf32> to vector<16x32xf32>
    %c0_9 = arith.constant 0 : index
    %c0_10 = arith.constant 0 : index
    %c0_11 = arith.constant 0 : index
    %9 = vector.load %arg2[%c0_9, %c0_10, %c0_11] : memref<1x16x1xi32, #tpu.memory_space<vmem>>, vector<1x16x1xi32>
    %10 = vector.shape_cast %9 : vector<1x16x1xi32> to vector<16x1xi32>
    %11 = arith.truncf %4 : vector<16x32xf32> to vector<16x32xbf16>
    %12 = arith.truncf %6 : vector<16x32xf32> to vector<16x32xbf16>
    %cst = arith.constant dense<0.000000e+00> : vector<16x16xf32>
    %13 = tpu.matmul %11, %12, %cst {dimension_numbers = #tpu.dot_dimension_numbers<[1], [1], [0], [0], [0, 0, 1, 0], [], []>} : vector<16x32xbf16>, vector<16x32xbf16>, vector<16x16xf32> -> vector<16x16xf32>
    %cst_12 = arith.constant 0.176776692 : f32
    %14 = vector.broadcast %cst_12 : f32 to vector<16x16xf32>
    %15 = arith.mulf %13, %14 : vector<16x16xf32>
    %c16_i32 = arith.constant 16 : i32
    %16 = arith.muli %arg1, %c16_i32 : i32
    %17 = tpu.iota {dimensions = array<i32: 1>} : vector<16x16xi32>
    %18 = vector.broadcast %16 : i32 to vector<16x16xi32>
    %19 = arith.addi %18, %17 : vector<16x16xi32>
    %c16_i32_13 = arith.constant 16 : i32
    %20 = vector.broadcast %c16_i32_13 : i32 to vector<16x16xi32>
    %21 = arith.cmpi sge, %19, %20 : vector<16x16xi32>
    %22 = vector.broadcast %10 : vector<16x1xi32> to vector<16x16xi32>
    %23 = arith.cmpi sgt, %19, %22 : vector<16x16xi32>
    %24 = arith.ori %21, %23 : vector<16x16xi1>
    %cst_14 = arith.constant -1.000000e+30 : f32
    %25 = vector.broadcast %cst_14 : f32 to vector<16x16xf32>
    %26 = arith.select %24, %25, %15 : vector<16x16xi1>, vector<16x16xf32>
    %c0_15 = arith.constant 0 : index
    %c0_16 = arith.constant 0 : index
    %27 = vector.load %arg7[%c0_15, %c0_16] : memref<16x1xf32, #tpu.memory_space<vmem>>, vector<16x1xf32>
    %cst_17 = arith.constant dense<0xFF800000> : vector<16xf32>
    %28 = vector.multi_reduction <maximumf>, %26, %cst_17 [1] : vector<16x16xf32> to vector<16xf32>
    %29 = vector.shape_cast %28 : vector<16xf32> to vector<16x1xf32>
    %30 = arith.maximumf %27, %29 : vector<16x1xf32>
    %31 = arith.subf %27, %30 : vector<16x1xf32>
    %32 = math.exp %31 : vector<16x1xf32>
    %33 = vector.broadcast %30 : vector<16x1xf32> to vector<16x16xf32>
    %34 = arith.subf %26, %33 : vector<16x16xf32>
    %35 = math.exp %34 : vector<16x16xf32>
    %cst_18 = arith.constant 0.000000e+00 : f32
    %36 = vector.broadcast %cst_18 : f32 to vector<16x16xf32>
    %37 = arith.select %24, %36, %35 : vector<16x16xi1>, vector<16x16xf32>
    %c0_19 = arith.constant 0 : index
    %c0_20 = arith.constant 0 : index
    %38 = vector.load %arg8[%c0_19, %c0_20] : memref<16x1xf32, #tpu.memory_space<vmem>>, vector<16x1xf32>
    %39 = arith.mulf %32, %38 : vector<16x1xf32>
    %cst_21 = arith.constant dense<0.000000e+00> : vector<16xf32>
    %40 = vector.multi_reduction <add>, %37, %cst_21 [1] : vector<16x16xf32> to vector<16xf32>
    %41 = vector.shape_cast %40 : vector<16xf32> to vector<16x1xf32>
    %42 = arith.addf %39, %41 : vector<16x1xf32>
    %c0_22 = arith.constant 0 : index
    %c0_23 = arith.constant 0 : index
    %43 = vector.load %arg8[%c0_22, %c0_23] : memref<16x1xf32, #tpu.memory_space<vmem>>, vector<16x1xf32>
    tpu.vector_store %arg8[%c0_22, %c0_23], %42 {strides = array<i32>} : memref<16x1xf32, #tpu.memory_space<vmem>>, vector<16x1xf32>,
    %c0_24 = arith.constant 0 : index
    %c0_25 = arith.constant 0 : index
    %44 = vector.load %arg9[%c0_24, %c0_25] : memref<16x32xf32, #tpu.memory_space<vmem>>, vector<16x32xf32>
    %45 = vector.broadcast %32 : vector<16x1xf32> to vector<16x32xf32>
    %46 = arith.mulf %45, %44 : vector<16x32xf32>
    %47 = arith.truncf %37 : vector<16x16xf32> to vector<16x16xbf16>
    %48 = arith.truncf %8 : vector<16x32xf32> to vector<16x32xbf16>
    %cst_26 = arith.constant dense<0.000000e+00> : vector<16x32xf32>
    %49 = tpu.matmul %47, %48, %cst_26 {dimension_numbers = #tpu.dot_dimension_numbers<[1], [0], [0], [1], [0, 0, 1, 1], [], []>} : vector<16x16xbf16>, vector<16x32xbf16>, vector<16x32xf32> -> vector<16x32xf32>
    %50 = arith.addf %46, %49 : vector<16x32xf32>
    %c0_27 = arith.constant 0 : index
    %c0_28 = arith.constant 0 : index
    %51 = vector.load %arg9[%c0_27, %c0_28] : memref<16x32xf32, #tpu.memory_space<vmem>>, vector<16x32xf32>
    tpu.vector_store %arg9[%c0_27, %c0_28], %50 {strides = array<i32>} : memref<16x32xf32, #tpu.memory_space<vmem>>, vector<16x32xf32>,
    %c0_29 = arith.constant 0 : index
    %c0_30 = arith.constant 0 : index
    %52 = vector.load %arg7[%c0_29, %c0_30] : memref<16x1xf32, #tpu.memory_space<vmem>>, vector<16x1xf32>
    tpu.vector_store %arg7[%c0_29, %c0_30], %30 {strides = array<i32>} : memref<16x1xf32, #tpu.memory_space<vmem>>, vector<16x1xf32>,
    %c0_i32_31 = arith.constant 0 : i32
    %53 = arith.cmpi eq, %arg1, %c0_i32_31 : i32
    %54 = arith.extui %53 : i1 to i32
    %c0_i32_32 = arith.constant 0 : i32
    %55 = arith.cmpi ne, %54, %c0_i32_32 : i32
    scf.if %55 {
      %c0_33 = arith.constant 0 : index
      %c0_34 = arith.constant 0 : index
      %56 = vector.load %arg8[%c0_33, %c0_34] : memref<16x1xf32, #tpu.memory_space<vmem>>, vector<16x1xf32>
      %57 = tpu.reciprocal %56 {approx = true} : vector<16x1xf32> -> vector<16x1xf32>
      %c0_35 = arith.constant 0 : index
      %c0_36 = arith.constant 0 : index
      %58 = vector.load %arg9[%c0_35, %c0_36] : memref<16x32xf32, #tpu.memory_space<vmem>>, vector<16x32xf32>
      %59 = vector.broadcast %57 : vector<16x1xf32> to vector<16x32xf32>
      %60 = arith.mulf %58, %59 : vector<16x32xf32>
      %c0_37 = arith.constant 0 : index
      %c0_38 = arith.constant 0 : index
      %c0_39 = arith.constant 0 : index
      %61 = vector.load %arg6[%c0_37, %c0_38, %c0_39] : memref<1x16x32xf32, #tpu.memory_space<vmem>>, vector<1x16x32xf32>
      %62 = vector.shape_cast %61 : vector<1x16x32xf32> to vector<16x32xf32>
      %63 = vector.shape_cast %60 : vector<16x32xf32> to vector<1x16x32xf32>
      tpu.vector_store %arg6[%c0_37, %c0_38, %c0_39], %63 {strides = array<i32>} : memref<1x16x32xf32, #tpu.memory_space<vmem>>, vector<1x16x32xf32>,
    } else {
    }
    return
  }
  func.func @transform_0(%arg0: i32, %arg1: i32) -> (i32, i32, i32) {
    %c0_i32 = arith.constant 0 : i32
    %c0_i32_0 = arith.constant 0 : i32
    %c0_i32_1 = arith.constant 0 : i32
    return %arg0, %c0_i32, %c0_i32_0 : i32, i32, i32
  }
  func.func @transform_1(%arg0: i32, %arg1: i32) -> (i32, i32, i32) {
    %c0_i32 = arith.constant 0 : i32
    %c0_i32_0 = arith.constant 0 : i32
    %c0_i32_1 = arith.constant 0 : i32
    return %arg0, %c0_i32, %c0_i32_0 : i32, i32, i32
  }
  func.func @transform_2(%arg0: i32, %arg1: i32) -> (i32, i32, i32) {
    %c0_i32 = arith.constant 0 : i32
    %c0_i32_0 = arith.constant 0 : i32
    return %arg0, %arg1, %c0_i32 : i32, i32, i32
  }
  func.func @transform_3(%arg0: i32, %arg1: i32) -> (i32, i32, i32) {
    %c0_i32 = arith.constant 0 : i32
    %c0_i32_0 = arith.constant 0 : i32
    return %arg0, %arg1, %c0_i32 : i32, i32, i32
  }
  func.func @transform_4(%arg0: i32, %arg1: i32) -> (i32, i32, i32) {
    %c0_i32 = arith.constant 0 : i32
    %c0_i32_0 = arith.constant 0 : i32
    %c0_i32_1 = arith.constant 0 : i32
    return %arg0, %c0_i32, %c0_i32_0 : i32, i32, i32
  }
}

</mosaic_0001>

<llo_original>
// kernel: tpu_custom_call.1
$region0: #{tpu_custom_call.1}
  #allocation0 [shape = 'u32[]', space=smem, size = 0x4, offset = 0x4, fixed_abs, tag = 'smem constant byte address 0x4 - core index']
  #allocation1 [shape = 'u32[144,128]{1,0:T(1,128)}', space=vmem, size = 0x12000, scoped, tag = 'internal scratch']
  #allocation2 [shape = 'f32[16,1]{1,0:T(8,128)}', space=vmem, size = 0x2000, scoped, tag = 'scratch operand']
  #allocation3 [shape = 'f32[16,1]{1,0:T(8,128)}', space=vmem, size = 0x2000, scoped, tag = 'scratch operand']
  #allocation4 [shape = 'f32[16,32]{1,0:T(8,128)}', space=vmem, size = 0x2000, scoped, tag = 'scratch operand']
  %s0 = inlined_call_operand.vmem [shape: s32[8,16,1], index: 0, kind: input, shape index: {}]
  %s1 = inlined_call_operand.vmem [shape: f32[8,16,32], index: 1, kind: input, shape index: {}]
  %s2 = inlined_call_operand.hbm [shape: f32[8,16,32], index: 2, kind: input, shape index: {}]
  %s3 = inlined_call_operand.hbm [shape: f32[8,16,32], index: 3, kind: input, shape index: {}]
  %s4 = inlined_call_operand.hbm [shape: f32[8,16,32], index: 4, kind: output, shape index: {}]
  %s5 = sld [smem:[#allocation0]]
  $region65: #{tpu_custom_call.1} parent=0
    _
  %s7 = ssub.s32 1, %s5
  %s8 = scalar_select 0, %s7, %s5
  $region1: #{tpu_custom_call.1} parent=0
    #allocation5 [shape = 'u8[16384]{0}', space=vmem, size = 0x4000, scoped, tag = 'input window, operand 2']
    #allocation6 [shape = 's32[2]{0}', space=sflag, size = 0x8, scoped, tag = 'scoped memory for tpu_custom_call.1']
    #allocation7 [shape = 's32[2]{0}', space=sflag, size = 0x8, scoped, tag = 'scoped memory for tpu_custom_call.1']
    #allocation8 [shape = 'u8[16384]{0}', space=vmem, size = 0x4000, scoped, tag = 'input window, operand 3']
    #allocation9 [shape = 's32[2]{0}', space=sflag, size = 0x8, scoped, tag = 'scoped memory for tpu_custom_call.1']
    #allocation10 [shape = 'u8[16384]{0}', space=vmem, size = 0x4000, scoped, tag = 'output window, operand 0']
    %9 = vsyncpa [#allocation6], 0
    %s10 = scalar_lea.sflag [#allocation6], 1
    %11 = vsyncpa %s10, 0
    %12 = vsyncpa [#allocation9], 0
    %s13 = scalar_lea.sflag [#allocation9], 1
    %14 = vsyncpa %s13, 0
    %15 = vsyncpa [#allocation7], 0
    %s16 = scalar_lea.sflag [#allocation7], 1
    %17 = vsyncpa %s16, 0
    loop: start=0, step=1, limit=10
    $region2: #{tpu_custom_call.1} parent=1 // loop_pre_header
      _
    $region3: #{tpu_custom_call.1} parent=1 // loop_header
      %s19 = sphi 0, %s23
      %p20 = scmp.ge.s32.totalorder %s19, 10
      %s26 = sphi 0, %s38
      %s27 = sphi 0, %s34
      %s28 = sphi 0, %s26
      %s29 = sphi 0, %s27
      %s30 = sphi 0, %s28
      %s31 = sphi 0, %s29
      %s41 = sphi 0, %s43
      %s44 = sphi 0, %s41
      %s45 = sphi 0, %s44
      %s61 = sphi 0, %s45
      %s67 = sphi 0, %s69
      %s70 = sphi 0, %s67
      %s71 = sphi 0, %s70
      %s87 = sphi 0, %s71
      %s95 = sphi 0, %s97
      %s98 = sphi 0, %s95
      %s99 = sphi 0, %s98
      %s115 = sphi 0, %s99
      %s123 = sphi 0, %s125
      %s126 = sphi 0, %s123
      %s127 = sphi 0, %s126
      %s143 = sphi 0, %s127
      %s149 = sphi 0, %s151
      %s152 = sphi 0, %s149
      %s153 = sphi 0, %s152
      %s169 = sphi 0, %s153
    $region4: #{tpu_custom_call.1} parent=1 // loop_header_branch
      %22 = sbr.rel (%p20) target = $region8
    $region5: #{tpu_custom_call.1} parent=1 // loop_body
      %s24 = ssub.s32 %s19, 1
      %s25 = ssub.s32 %s19, 2
      %s32 = sadd.s32 1, %s27
      %p33 = scmp.ge.s32.totalorder %s32, 1
      %s34 = scalar_select %p33, 0, %s32
      %s35 = sadd.s32 1, %s26
      %s36 = scalar_select %p33, %s35, %s26
      %p37 = scmp.ge.s32.totalorder %s36, 8
      %s38 = scalar_select %p37, 0, %s36
      %s39 = ssub.s32 %s26, %s38
      %p40 = scmp.eq.s32.totalorder %s39, 0
      %s42 = sadd.s32 %s41, 1
      %s43 = scalar_select %p40, %s41, %s42
      %p46 = pneg %p40
      %p47 = scmp.eq.s32.totalorder %s19, 7
      %p48 = por %p46, %p47
      %p49 = scmp.ne.s32.totalorder %s41, %s44
      %p50 = scmp.eq.s32.totalorder %s19, 0
      %p51 = por %p49, %p50
      %p52 = scmp.ne.s32.totalorder %s41, %s44
      %p53 = scmp.eq.s32.totalorder %s24, 7
      %p54 = por %p52, %p53
      %p55 = scmp.ne.s32.totalorder %s44, %s45
      %p56 = scmp.eq.s32.totalorder %s24, 0
      %p57 = por %p55, %p56
      %p58 = scmp.ne.s32.totalorder %s44, %s45
      %p59 = scmp.eq.s32.totalorder %s25, 7
      %p60 = por %p58, %p59
      %p62 = scmp.ne.s32.totalorder %s45, %s61
      %p63 = scmp.eq.s32.totalorder %s25, 0
      %p64 = por %p62, %p63
      %s65 = ssub.s32 %s26, %s38
      %p66 = scmp.eq.s32.totalorder %s65, 0
      %s68 = sadd.s32 %s67, 1
      %s69 = scalar_select %p66, %s67, %s68
      %p72 = pneg %p66
      %p73 = scmp.eq.s32.totalorder %s19, 7
      %p74 = por %p72, %p73
      %p75 = scmp.ne.s32.totalorder %s67, %s70
      %p76 = scmp.eq.s32.totalorder %s19, 0
      %p77 = por %p75, %p76
      %p78 = scmp.ne.s32.totalorder %s67, %s70
      %p79 = scmp.eq.s32.totalorder %s24, 7
      %p80 = por %p78, %p79
      %p81 = scmp.ne.s32.totalorder %s70, %s71
      %p82 = scmp.eq.s32.totalorder %s24, 0
      %p83 = por %p81, %p82
      %p84 = scmp.ne.s32.totalorder %s70, %s71
      %p85 = scmp.eq.s32.totalorder %s25, 7
      %p86 = por %p84, %p85
      %p88 = scmp.ne.s32.totalorder %s71, %s87
      %p89 = scmp.eq.s32.totalorder %s25, 0
      %p90 = por %p88, %p89
      %s91 = ssub.s32 %s26, %s38
      %s92 = ssub.s32 %s27, %s34
      %s93 = sor.u32 %s91, %s92
      %p94 = scmp.eq.s32.totalorder %s93, 0
      %s96 = sadd.s32 %s95, 1
      %s97 = scalar_select %p94, %s95, %s96
      %p100 = pneg %p94
      %p101 = scmp.eq.s32.totalorder %s19, 7
      %p102 = por %p100, %p101
      %p103 = scmp.ne.s32.totalorder %s95, %s98
      %p104 = scmp.eq.s32.totalorder %s19, 0
      %p105 = por %p103, %p104
      %p106 = scmp.ne.s32.totalorder %s95, %s98
      %p107 = scmp.eq.s32.totalorder %s24, 7
      %p108 = por %p106, %p107
      %p109 = scmp.ne.s32.totalorder %s98, %s99
      %p110 = scmp.eq.s32.totalorder %s24, 0
      %p111 = por %p109, %p110
      %p112 = scmp.ne.s32.totalorder %s98, %s99
      %p113 = scmp.eq.s32.totalorder %s25, 7
      %p114 = por %p112, %p113
      %p116 = scmp.ne.s32.totalorder %s99, %s115
      %p117 = scmp.eq.s32.totalorder %s25, 0
      %p118 = por %p116, %p117
      %s119 = ssub.s32 %s26, %s38
      %s120 = ssub.s32 %s27, %s34
      %s121 = sor.u32 %s119, %s120
      %p122 = scmp.eq.s32.totalorder %s121, 0
      %s124 = sadd.s32 %s123, 1
      %s125 = scalar_select %p122, %s123, %s124
      %p128 = pneg %p122
      %p129 = scmp.eq.s32.totalorder %s19, 7
      %p130 = por %p128, %p129
      %p131 = scmp.ne.s32.totalorder %s123, %s126
      %p132 = scmp.eq.s32.totalorder %s19, 0
      %p133 = por %p131, %p132
      %p134 = scmp.ne.s32.totalorder %s123, %s126
      %p135 = scmp.eq.s32.totalorder %s24, 7
      %p136 = por %p134, %p135
      %p137 = scmp.ne.s32.totalorder %s126, %s127
      %p138 = scmp.eq.s32.totalorder %s24, 0
      %p139 = por %p137, %p138
      %p140 = scmp.ne.s32.totalorder %s126, %s127
      %p141 = scmp.eq.s32.totalorder %s25, 7
      %p142 = por %p140, %p141
      %p144 = scmp.ne.s32.totalorder %s127, %s143
      %p145 = scmp.eq.s32.totalorder %s25, 0
      %p146 = por %p144, %p145
      %s147 = ssub.s32 %s26, %s38
      %p148 = scmp.eq.s32.totalorder %s147, 0
      %s150 = sadd.s32 %s149, 1
      %s151 = scalar_select %p148, %s149, %s150
      %p154 = pneg %p148
      %p155 = scmp.eq.s32.totalorder %s19, 7
      %p156 = por %p154, %p155
      %p157 = scmp.ne.s32.totalorder %s149, %s152
      %p158 = scmp.eq.s32.totalorder %s19, 0
      %p159 = por %p157, %p158
      %p160 = scmp.ne.s32.totalorder %s149, %s152
      %p161 = scmp.eq.s32.totalorder %s24, 7
      %p162 = por %p160, %p161
      %p163 = scmp.ne.s32.totalorder %s152, %s153
      %p164 = scmp.eq.s32.totalorder %s24, 0
      %p165 = por %p163, %p164
      %p166 = scmp.ne.s32.totalorder %s152, %s153
      %p167 = scmp.eq.s32.totalorder %s25, 7
      %p168 = por %p166, %p167
      %p170 = scmp.ne.s32.totalorder %s153, %s169
      %p171 = scmp.eq.s32.totalorder %s25, 0
      %p172 = por %p170, %p171
      %p173 = scmp.le.s32.totalorder 1, %s19
      %p174 = scmp.lt.s32.totalorder %s19, 9
      %p175 = pnand %p173, %p174
      %p176 = pneg %p175
      // Predicated region
      $region9: #{tpu_custom_call.1} parent=5 // pred_check
        _
      $region10: #{tpu_custom_call.1} parent=5 // pred_check_branch
        %178 = sbr.rel (%p175) target = $region12
      $region11: #{tpu_custom_call.1} parent=5 // pred_region
        %s179 = ssub.s32 %s19, 1
      $region12: #{tpu_custom_call.1} parent=5 // pred_fallthru
        _
      %p180 = scmp.lt.s32.totalorder %s19, 8
      // Predicated region
      $region13: #{tpu_custom_call.1} parent=5 // pred_check
        %p181 = pneg %p180
      $region14: #{tpu_custom_call.1} parent=5 // pred_check_branch
        %183 = sbr.rel (%p181) target = $region16
      $region15: #{tpu_custom_call.1} parent=5 // pred_region
        // Predicated region
        $region17: #{tpu_custom_call.1} parent=15 // pred_check
          %p184 = pneg %p51
        $region18: #{tpu_custom_call.1} parent=15 // pred_check_branch
          %186 = sbr.rel (%p184) target = $region20
        $region19: #{tpu_custom_call.1} parent=15 // pred_region
          %p187 = scmp.lt.s32.totalorder %s26, 7
          %s188 = scalar_select %p187, %s26, 7
          %s189 = smul.addr %s188, 2
          %s190 = smul.addr %s189, 8
          %s191 = scalar_lea.vmem %s0, %s190
        $region20: #{tpu_custom_call.1} parent=15 // pred_fallthru
          _
        // Predicated region
        $region21: #{tpu_custom_call.1} parent=15 // pred_check
          %p192 = pneg %p77
        $region22: #{tpu_custom_call.1} parent=15 // pred_check_branch
          %194 = sbr.rel (%p192) target = $region24
        $region23: #{tpu_custom_call.1} parent=15 // pred_region
          %p195 = scmp.lt.s32.totalorder %s26, 7
          %s196 = scalar_select %p195, %s26, 7
          %s197 = smul.addr %s196, 2
          %s198 = smul.addr %s197, 8
          %s199 = scalar_lea.vmem %s1, %s198
        $region24: #{tpu_custom_call.1} parent=15 // pred_fallthru
          _
        // Predicated region
        $region25: #{tpu_custom_call.1} parent=15 // pred_check
          %p200 = pneg %p105
        $region26: #{tpu_custom_call.1} parent=15 // pred_check_branch
          %202 = sbr.rel (%p200) target = $region28
        $region27: #{tpu_custom_call.1} parent=15 // pred_region
          %s203 = sand.u32 %s95, 1
          %s204 = scalar_lea.sflag [#allocation6], %s203
          %s205 = sand.u32 %s95, 1
          %s206 = smul.addr %s205, 16
          %s207 = scalar_lea.vmem [#allocation5], %s206
          %s208 = smul.u32 2, %s27
          %s210 = ssub.s32 256, 256
          %211 = vsyncadd %s204, %s210
          %s212 = smul.addr %s26, 2
          %s213 = sadd.s32 %s208, %s212
          %s214 = smul.addr %s213, 128
          %s215 = scalar_lea.hbm %s2, %s214
          %s216 = sshll.u32 %s207, 4
          %s217 = int_to_ptr.vmem [resolvable:$true] %s216
          %222 = dma.hbm_to_vmem [thread:$0]  %s215, 256, %s217, %s204, 128, 128, 8
        $region28: #{tpu_custom_call.1} parent=15 // pred_fallthru
          _
        // Predicated region
        $region29: #{tpu_custom_call.1} parent=15 // pred_check
          %p223 = pneg %p133
        $region30: #{tpu_custom_call.1} parent=15 // pred_check_branch
          %225 = sbr.rel (%p223) target = $region32
        $region31: #{tpu_custom_call.1} parent=15 // pred_region
          %s226 = sand.u32 %s123, 1
          %s227 = scalar_lea.sflag [#allocation9], %s226
          %s228 = sand.u32 %s123, 1
          %s229 = smul.addr %s228, 16
          %s230 = scalar_lea.vmem [#allocation8], %s229
          %s231 = smul.u32 2, %s27
          %s233 = ssub.s32 256, 256
          %234 = vsyncadd %s227, %s233
          %s235 = smul.addr %s26, 2
          %s236 = sadd.s32 %s231, %s235
          %s237 = smul.addr %s236, 128
          %s238 = scalar_lea.hbm %s3, %s237
          %s239 = sshll.u32 %s230, 4
          %s240 = int_to_ptr.vmem [resolvable:$true] %s239
          %245 = dma.hbm_to_vmem [thread:$0]  %s238, 256, %s240, %s227, 128, 128, 8
        $region32: #{tpu_custom_call.1} parent=15 // pred_fallthru
          _
      $region16: #{tpu_custom_call.1} parent=5 // pred_fallthru
        _
      %p246 = scmp.le.s32.totalorder 1, %s19
      %p247 = scmp.lt.s32.totalorder %s19, 9
      %p248 = pnand %p246, %p247
      %p249 = pneg %p248
      // Predicated region
      $region33: #{tpu_custom_call.1} parent=5 // pred_check
        _
      $region34: #{tpu_custom_call.1} parent=5 // pred_check_branch
        %251 = sbr.rel (%p248) target = $region36
      $region35: #{tpu_custom_call.1} parent=5 // pred_region
        %s252 = ssub.s32 %s19, 1
        %s253 = sand.u32 %s98, 1
        %s254 = scalar_lea.sflag [#allocation6], %s253
        %s255 = sand.u32 %s98, 1
        %s256 = smul.addr %s255, 16
        %s257 = scalar_lea.vmem [#allocation5], %s256
        // Predicated region
        $region37: #{tpu_custom_call.1} parent=35 // pred_check
          %p258 = pneg %p111
        $region38: #{tpu_custom_call.1} parent=35 // pred_check_branch
          %260 = sbr.rel (%p258) target = $region40
        $region39: #{tpu_custom_call.1} parent=35 // pred_region
          %261 = dma.done %s254, 256
        $region40: #{tpu_custom_call.1} parent=35 // pred_fallthru
          _
        %s262 = sand.u32 %s126, 1
        %s263 = scalar_lea.sflag [#allocation9], %s262
        %s264 = sand.u32 %s126, 1
        %s265 = smul.addr %s264, 16
        %s266 = scalar_lea.vmem [#allocation8], %s265
        // Predicated region
        $region41: #{tpu_custom_call.1} parent=35 // pred_check
          %p267 = pneg %p139
        $region42: #{tpu_custom_call.1} parent=35 // pred_check_branch
          %269 = sbr.rel (%p267) target = $region44
        $region43: #{tpu_custom_call.1} parent=35 // pred_region
          %270 = dma.done %s263, 256
        $region44: #{tpu_custom_call.1} parent=35 // pred_fallthru
          _
        %p271 = scmp.lt.s32.totalorder %s28, 7
        %s272 = scalar_select %p271, %s28, 7
        %s273 = smul.addr %s272, 2
        %s274 = smul.addr %s273, 8
        %s275 = scalar_lea.vmem %s0, %s274
        %p276 = pneg %p57
        %p277 = pneg %p54
        %p278 = scmp.lt.s32.totalorder %s28, 7
        %s279 = scalar_select %p278, %s28, 7
        %s280 = smul.addr %s279, 2
        %s281 = smul.addr %s280, 8
        %s282 = scalar_lea.vmem %s1, %s281
        %p283 = pneg %p83
        %p284 = pneg %p80
        %s285 = sand.u32 %s98, 1
        %s286 = scalar_lea.sflag [#allocation6], %s285
        %s287 = sand.u32 %s98, 1
        %s288 = smul.addr %s287, 16
        %s289 = scalar_lea.vmem [#allocation5], %s288
        %p290 = pneg %p111
        %p291 = pneg %p108
        %s292 = sand.u32 %s126, 1
        %s293 = scalar_lea.sflag [#allocation9], %s292
        %s294 = sand.u32 %s126, 1
        %s295 = smul.addr %s294, 16
        %s296 = scalar_lea.vmem [#allocation8], %s295
        %p297 = pneg %p139
        %p298 = pneg %p136
        %p299 = pneg %p165
        %p300 = pneg %p162
        %s301 = sand.u32 %s152, 1
        %s302 = scalar_lea.sflag [#allocation7], %s301
        %s303 = sand.u32 %s152, 1
        %s304 = smul.addr %s303, 16
        %s305 = scalar_lea.vmem [#allocation10], %s304
        %p306 = scmp.lt.s32.totalorder %s28, 7
        %s307 = scalar_select %p306, %s28, 7
        %s308 = smul.addr %s307, 2
        %s309 = smul.addr %s308, 8
        %s310 = scalar_lea.vmem %s0, %s309
        %p311 = scmp.lt.s32.totalorder %s28, 7
        %s312 = scalar_select %p311, %s28, 7
        %s313 = smul.addr %s312, 2
        %s314 = smul.addr %s313, 8
        %s315 = scalar_lea.vmem %s1, %s314
        %s316 = smul.u32 2, %s29
        %s317 = smul.u32 2, %s29
        %p319 = scmp.eq.s32.totalorder %s29, 0
        // Predicated region
        $region45: #{tpu_custom_call.1} parent=35 // pred_check
          %p320 = pneg %p319
        $region46: #{tpu_custom_call.1} parent=35 // pred_check_branch
          %322 = sbr.rel (%p320) target = $region48
        $region47: #{tpu_custom_call.1} parent=35 // pred_region
          %vm323 = vcmask 7168
          %324 = vst.msk [vmem:[#allocation2] sm:$0xff] %vm323, -inf
          %325 = vst.msk [vmem:[#allocation2 + $0x8] sm:$0xff] %vm323, -inf
          %326 = vst.msk [vmem:[#allocation3] sm:$0xff] %vm323, 0.0
          %327 = vst.msk [vmem:[#allocation3 + $0x8] sm:$0xff] %vm323, 0.0
          %vm328 = vcmask 261120
          %329 = vst.msk [vmem:[#allocation4] sm:$0xff] %vm328, 0.0
          %330 = vst.msk [vmem:[#allocation4 + $0x8] sm:$0xff] %vm328, 0.0
        $region48: #{tpu_custom_call.1} parent=35 // pred_fallthru
          _
        %v331 = vld [vmem:[%s315] sm:$0xff]
        %v332 = vld [vmem:[%s315 + $0x8] sm:$0xff]
        %v333 = vld [vmem:[%s257] sm:$0xff]
        %v334 = vld [vmem:[%s257 + $0x8] sm:$0xff]
        %v335 = vld [vmem:[%s266] sm:$0xff]
        %v336 = vld [vmem:[%s266 + $0x8] sm:$0xff]
        %v337 = vld [vmem:[%s310] sm:$0xff]
        %v338 = vld [vmem:[%s310 + $0x8] sm:$0xff]
        %v339 = vpack.c.bf16 %v332, %v331
        %v340 = vpack.c.bf16 %v334, %v333
        %vm341 = vcmask 261120
        %v343 = vsel %vm341, %v339, 0
        %v346 = vsel %vm341, %v340, 0
        %348 = vmatprep.subr.bf16.mxu0 0
        %349 = vmatpush1.bf16.xpose.msra.mxu0 0
        %350 = vmatprep.subr.bf16.mxu0 0
        %351 = vmatpush1.bf16.xpose.msra.mxu0 0
        %352 = vmatprep.subr.bf16.mxu0 0
        %353 = vmatpush1.bf16.xpose.msra.mxu0 0
        %354 = vmatprep.subr.bf16.mxu0 0
        %355 = vmatpush1.bf16.xpose.msra.mxu0 0
        %356 = vmatprep.subr.bf16.mxu0 0
        %357 = vmatpush1.bf16.xpose.msra.mxu0 0
        %358 = vmatprep.subr.bf16.mxu0 0
        %359 = vmatpush1.bf16.xpose.msra.mxu0 0
        %360 = vmatprep.subr.bf16.mxu0 0
        %361 = vmatpush1.bf16.xpose.msra.mxu0 0
        %362 = vmatprep.subr.bf16.mxu0 0
        %363 = vmatpush1.bf16.xpose.msra.mxu0 %v346
        %364 = vmatprep.subr.bf16.mxu0 0
        %365 = vmatpush2.bf16.xpose.msra.mxu0 0
        %366 = vmatprep.subr.bf16.mxu0 0
        %367 = vmatpush2.bf16.xpose.msra.mxu0 0
        %368 = vmatprep.subr.bf16.mxu0 0
        %369 = vmatpush2.bf16.xpose.msra.mxu0 0
        %370 = vmatprep.subr.bf16.mxu0 0
        %371 = vmatpush2.bf16.xpose.msra.mxu0 0
        %372 = vmatprep.subr.bf16.mxu0 0
        %373 = vmatpush2.bf16.xpose.msra.mxu0 0
        %374 = vmatprep.subr.bf16.mxu0 0
        %375 = vmatpush2.bf16.xpose.msra.mxu0 0
        %376 = vmatprep.subr.bf16.mxu0 0
        %377 = vmatpush2.bf16.xpose.msra.mxu0 0
        %378 = vmatprep.subr.bf16.mxu0 0
        %379 = vmatpush2.bf16.xpose.msra.mxu0 0
        %380 = vmatprep.mubr.bf16.mxu0 0
        %381 = vmatmul.mubr.bf16.gmra.mxu0 %v343
        %v382 = vpop.f32.mrf.mxu0
        %v383 = vadd.f32 0.0, %v382
        %v384 = vpop.f32.mrf.mxu0
        %v385 = vpop.f32.mrf.mxu0
        %v386 = vadd.f32 0.0, %v385
        %v387 = vpop.f32.mrf.mxu0
        %388 = vdwg.mxu0
        %v389 = vmul.f32 %v383, 0.17677669
        %v390 = vmul.f32 %v386, 0.17677669
        %s391 = smul.u32 %s29, 16
        %v392 = vlaneseq
        %v393 = vand.u32 %v392, 127
        %v394 = vstv %s391
        %v395 = vadd.s32 %v394, %v393
        %vm396 = vcmp.ge.s32.totalorder %v395, 16
        %397 = vset.pattern.permute.xlu0 0
        %398 = vperm.xlu0 %397, %v337
        %v399 = vpop.permute.xlu0 %398
        %400 = vset.pattern.permute.xlu0 0
        %401 = vperm.xlu0 %400, %v338
        %v402 = vpop.permute.xlu0 %401
        %vm403 = vcmp.gt.s32.totalorder %v395, %v399
        %vm404 = vcmp.gt.s32.totalorder %v395, %v402
        %vm405 = vmor %vm396, %vm403
        %vm406 = vmor %vm396, %vm404
        %v407 = vsel %vm405, -1e+30, %v389
        %v408 = vsel %vm406, -1e+30, %v390
        %v409 = vld [vmem:[#allocation2] sm:$0xff]
        %v410 = vld [vmem:[#allocation2 + $0x8] sm:$0xff]
        %vm411 = vcmask 130048
        %v412 = vsel %vm411, %v407, -inf
        %413 = vmax.xlane.f32.xlu0 %v412
        %v414 = vpop.xlane.xlu0 %413
        %v415 = vsel %vm411, %v408, -inf
        %416 = vmax.xlane.f32.xlu0 %v415
        %v417 = vpop.xlane.xlu0 %416
        %v418 = vmax.f32 %v409, %v414
        %v419 = vmax.f32 %v410, %v417
        %v420 = vsub.f32 %v409, %v418
        %v421 = vsub.f32 %v410, %v419
        %v422 = vmul.f32 %v420, 1.442695
        %v423 = vpow.pop %v422
        %v424 = vmul.f32 %v421, 1.442695
        %v425 = vpow.pop %v424
        %427 = vset.pattern.permute.xlu0 0
        %428 = vperm.xlu0 %427, %v418
        %v429 = vpop.permute.xlu0 %428
        %432 = vset.pattern.permute.xlu0 0
        %433 = vperm.xlu0 %432, %v419
        %v434 = vpop.permute.xlu0 %433
        %v436 = vsub.f32 %v407, %v429
        %v437 = vsub.f32 %v408, %v434
        %v438 = vmul.f32 %v436, 1.442695
        %v439 = vpow.pop %v438
        %v440 = vmul.f32 %v437, 1.442695
        %v441 = vpow.pop %v440
        %v442 = vsel %vm405, 0.0, %v439
        %v443 = vsel %vm406, 0.0, %v441
        %v444 = vld [vmem:[#allocation3] sm:$0xff]
        %v445 = vld [vmem:[#allocation3 + $0x8] sm:$0xff]
        %v446 = vmul.f32 %v423, %v444
        %v447 = vmul.f32 %v425, %v445
        %v448 = vsel %vm411, %v442, 0.0
        %449 = vadd.xlane.f32.xlu0 %v448
        %v450 = vpop.xlane.xlu0 %449
        %v451 = vsel %vm411, %v443, 0.0
        %452 = vadd.xlane.f32.xlu0 %v451
        %v453 = vpop.xlane.xlu0 %452
        %v454 = vadd.f32 %v446, %v450
        %v455 = vadd.f32 %v447, %v453
        %vm456 = vcmask 7168
        %457 = vst.msk [vmem:[#allocation3] sm:$0xff] %vm456, %v454
        %458 = vst.msk [vmem:[#allocation3 + $0x8] sm:$0xff] %vm456, %v455
        %v459 = vld [vmem:[#allocation4] sm:$0xff]
        %v460 = vld [vmem:[#allocation4 + $0x8] sm:$0xff]
        %462 = vset.pattern.permute.xlu0 0
        %463 = vperm.xlu0 %462, %v423
        %v464 = vpop.permute.xlu0 %463
        %467 = vset.pattern.permute.xlu0 0
        %468 = vperm.xlu0 %467, %v425
        %v469 = vpop.permute.xlu0 %468
        %v471 = vmul.f32 %v464, %v459
        %v472 = vmul.f32 %v469, %v460
        %v473 = vpack.c.bf16 %v443, %v442
        %v474 = vpack.c.bf16 %v336, %v335
        %v476 = vsel %vm411, %v473, 0
        %478 = vmatprep.subr.bf16.mxu0 0
        %479 = vmatpush1.bf16.msra.mxu0 0
        %480 = vmatprep.subr.bf16.mxu0 0
        %481 = vmatpush1.bf16.msra.mxu0 0
        %482 = vmatprep.subr.bf16.mxu0 0
        %483 = vmatpush1.bf16.msra.mxu0 0
        %484 = vmatprep.subr.bf16.mxu0 0
        %485 = vmatpush1.bf16.msra.mxu0 0
        %486 = vmatprep.subr.bf16.mxu0 0
        %487 = vmatpush1.bf16.msra.mxu0 0
        %488 = vmatprep.subr.bf16.mxu0 0
        %489 = vmatpush1.bf16.msra.mxu0 0
        %490 = vmatprep.subr.bf16.mxu0 0
        %491 = vmatpush1.bf16.msra.mxu0 0
        %492 = vmatprep.subr.bf16.mxu0 0
        %493 = vmatpush1.bf16.msra.mxu0 %v474
        %494 = vmatprep.subr.bf16.mxu0 0
        %495 = vmatpush2.bf16.msra.mxu0 0
        %496 = vmatprep.subr.bf16.mxu0 0
        %497 = vmatpush2.bf16.msra.mxu0 0
        %498 = vmatprep.subr.bf16.mxu0 0
        %499 = vmatpush2.bf16.msra.mxu0 0
        %500 = vmatprep.subr.bf16.mxu0 0
        %501 = vmatpush2.bf16.msra.mxu0 0
        %502 = vmatprep.subr.bf16.mxu0 0
        %503 = vmatpush2.bf16.msra.mxu0 0
        %504 = vmatprep.subr.bf16.mxu0 0
        %505 = vmatpush2.bf16.msra.mxu0 0
        %506 = vmatprep.subr.bf16.mxu0 0
        %507 = vmatpush2.bf16.msra.mxu0 0
        %508 = vmatprep.subr.bf16.mxu0 0
        %509 = vmatpush2.bf16.msra.mxu0 0
        %510 = vmatprep.mubr.bf16.mxu0 0
        %511 = vmatmul.mubr.bf16.gmra.mxu0 %v476
        %v512 = vpop.f32.mrf.mxu0
        %v513 = vadd.f32 0.0, %v512
        %v514 = vpop.f32.mrf.mxu0
        %v515 = vpop.f32.mrf.mxu0
        %v516 = vadd.f32 0.0, %v515
        %v517 = vpop.f32.mrf.mxu0
        %518 = vdwg.mxu0
        %v519 = vadd.f32 %v471, %v513
        %v520 = vadd.f32 %v472, %v516
        %521 = vst.msk [vmem:[#allocation4] sm:$0xff] %vm341, %v519
        %522 = vst.msk [vmem:[#allocation4 + $0x8] sm:$0xff] %vm341, %v520
        %523 = vst.msk [vmem:[#allocation2] sm:$0xff] %vm456, %v418
        %524 = vst.msk [vmem:[#allocation2 + $0x8] sm:$0xff] %vm456, %v419
        // Predicated region
        $region49: #{tpu_custom_call.1} parent=35 // pred_check
          %p525 = pneg %p319
        $region50: #{tpu_custom_call.1} parent=35 // pred_check_branch
          %527 = sbr.rel (%p525) target = $region52
        $region51: #{tpu_custom_call.1} parent=35 // pred_region
          %v528 = vld [vmem:[#allocation3] sm:$0xff]
          %v529 = vld [vmem:[#allocation3 + $0x8] sm:$0xff]
          %v530 = vrcp.pop %v528
          %v531 = vrcp.pop %v529
          %v532 = vld [vmem:[#allocation4] sm:$0xff]
          %v533 = vld [vmem:[#allocation4 + $0x8] sm:$0xff]
          %535 = vset.pattern.permute.xlu0 0
          %536 = vperm.xlu0 %535, %v530
          %v537 = vpop.permute.xlu0 %536
          %540 = vset.pattern.permute.xlu0 0
          %541 = vperm.xlu0 %540, %v531
          %v542 = vpop.permute.xlu0 %541
          %v544 = vmul.f32 %v532, %v537
          %v545 = vmul.f32 %v533, %v542
          %546 = vst.msk [vmem:[%s305] sm:$0xff] %vm341, %v544
          %547 = vst.msk [vmem:[%s305 + $0x8] sm:$0xff] %vm341, %v545
        $region52: #{tpu_custom_call.1} parent=35 // pred_fallthru
          _
        %s548 = sand.u32 %s152, 1
        %s549 = scalar_lea.sflag [#allocation7], %s548
        %s550 = sand.u32 %s152, 1
        %s551 = smul.addr %s550, 16
        %s552 = scalar_lea.vmem [#allocation10], %s551
        // Predicated region
        $region53: #{tpu_custom_call.1} parent=35 // pred_check
          %p553 = pneg %p162
        $region54: #{tpu_custom_call.1} parent=35 // pred_check_branch
          %555 = sbr.rel (%p553) target = $region56
        $region55: #{tpu_custom_call.1} parent=35 // pred_region
          %s557 = ssub.s32 256, 256
          %558 = vsyncadd %s549, %s557
          %s559 = smul.addr %s28, 2
          %s560 = smul.addr %s559, 128
          %s561 = scalar_lea.hbm %s4, %s560
          %s562 = sshll.u32 %s552, 4
          %s563 = int_to_ptr.vmem [resolvable:$true] %s562
          %568 = dma.vmem_to_hbm [thread:$0]  %s563, 256, %s561, %s549, 128, 128, 8
        $region56: #{tpu_custom_call.1} parent=35 // pred_fallthru
          _
      $region36: #{tpu_custom_call.1} parent=5 // pred_fallthru
        _
      %p569 = scmp.le.s32.totalorder 2, %s19
      // Predicated region
      $region57: #{tpu_custom_call.1} parent=5 // pred_check
        %p570 = pneg %p569
      $region58: #{tpu_custom_call.1} parent=5 // pred_check_branch
        %572 = sbr.rel (%p570) target = $region60
      $region59: #{tpu_custom_call.1} parent=5 // pred_region
        %s573 = ssub.s32 %s19, 2
        // Predicated region
        $region61: #{tpu_custom_call.1} parent=59 // pred_check
          %p574 = pneg %p168
        $region62: #{tpu_custom_call.1} parent=59 // pred_check_branch
          %576 = sbr.rel (%p574) target = $region64
        $region63: #{tpu_custom_call.1} parent=59 // pred_region
          %s577 = sand.u32 %s153, 1
          %s578 = scalar_lea.sflag [#allocation7], %s577
          %s579 = sand.u32 %s153, 1
          %s580 = smul.addr %s579, 16
          %s581 = scalar_lea.vmem [#allocation10], %s580
          %582 = dma.done %s578, 256
        $region64: #{tpu_custom_call.1} parent=59 // pred_fallthru
          _
      $region60: #{tpu_custom_call.1} parent=5 // pred_fallthru
        _
    $region6: #{tpu_custom_call.1} parent=1 // loop_footer
      %s23 = sadd.s32 1, %s19
    $region7: #{tpu_custom_call.1} parent=1 // loop_footer_branch
      %18 = sbr.rel target = $region3
    $region8: #{tpu_custom_call.1} parent=1 // loop_exit
      _
    %583 = vsyncpa [#allocation6], 1
    %s584 = scalar_lea.sflag [#allocation6], 1
    %585 = vsyncpa %s584, 1
    %586 = vsyncpa [#allocation9], 1
    %s587 = scalar_lea.sflag [#allocation9], 1
    %588 = vsyncpa %s587, 1
    %589 = vsyncpa [#allocation7], 1
    %s590 = scalar_lea.sflag [#allocation7], 1
    %591 = vsyncpa %s590, 1

</llo_original>
